<compile_context>
chip_gen: v7x
topology: tpu7x:2x2x1
jax: 0.10.0
libtpu: 0.0.40
codegen_flags: <defaults>
</compile_context>

<pallas_src>
import jax
import jax.numpy as jnp
from jax.experimental import pallas as pl
from jax.experimental.pallas import tpu as pltpu


def _round_up(x: int, m: int) -> int:
    return ((x + m - 1) // m) * m


def _choose_row_tile(n: int, c: int, itemsize: int,
                     target_block_bytes: int = 4 * 1024 * 1024) -> int:
    """Row-tile TB: big enough to amortize per-grid-step overhead, small enough
    that 2 pipeline buffers of the logits block fit every generation's scoped
    VMEM (v7x: 64 MiB physical / 32 MiB scoped default)."""
    tb = target_block_bytes // max(1, c * itemsize)
    tb = max(8, min(2048, (tb // 8) * 8))
    return min(tb, _round_up(n, 8))


def _weighted_ce_kernel(logits_ref, tgt_ref, w_ref, out_ref):
    """One row-block: sum_i w_i * cross_entropy(logits_i, tgt_i) -> out tile [0, 0]."""
    x = logits_ref[...].astype(jnp.float32)            # (TB, C); f32 math even for bf16 inputs
    t = tgt_ref[...]                                    # (TB, 1) int32 class ids
    w = w_ref[...]                                      # (TB, 1) f32 row weights (0 for padding)

    # stable log-sum-exp over the class (lane) axis
    m = jnp.max(x, axis=1, keepdims=True)               # (TB, 1)
    lse = m + jnp.log(jnp.sum(jnp.exp(x - m), axis=1, keepdims=True))
    # pick the target-class logit via one-hot select (no dynamic gather on TPU)
    lane = jax.lax.broadcasted_iota(jnp.int32, x.shape, 1)
    picked = jnp.sum(jnp.where(lane == t, x, 0.0), axis=1, keepdims=True)
    ce = lse - picked                                    # (TB, 1) per-row cross-entropy

    partial = jnp.sum(ce * w, axis=0, keepdims=True)     # (1, 1) weighted block sum

    # write the partial into element [0, 0] of this block's lane-dense (8, 128) tile
    r = jax.lax.broadcasted_iota(jnp.int32, (8, 128), 0)
    c = jax.lax.broadcasted_iota(jnp.int32, (8, 128), 1)
    out_ref[...] = jnp.where((r == 0) & (c == 0), partial, 0.0).astype(jnp.float32)


def weighted_cross_entropy_sum(logits, targets, weights):
    """Returns sum_i weights[i] * CE(logits[i], targets[i]) for logits of shape (N, C)."""
    n, c = logits.shape
    tb = _choose_row_tile(n, c, jnp.dtype(logits.dtype).itemsize)
    n_pad = _round_up(n, tb)
    if n_pad != n:
        logits = jnp.pad(logits, ((0, n_pad - n), (0, 0)))
        targets = jnp.pad(targets, ((0, n_pad - n),))
        weights = jnp.pad(weights, ((0, n_pad - n),))    # padded rows get weight 0.0
    num_blocks = n_pad // tb

    tgt2 = targets.reshape(n_pad, 1).astype(jnp.int32)
    w2 = weights.reshape(n_pad, 1).astype(jnp.float32)

    partials = pl.pallas_call(
        _weighted_ce_kernel,
        out_shape=jax.ShapeDtypeStruct((num_blocks * 8, 128), jnp.float32),
        grid=(num_blocks,),
        in_specs=[
            pl.BlockSpec((tb, c), lambda i: (i, 0)),     # class axis = full lane dim
            pl.BlockSpec((tb, 1), lambda i: (i, 0)),
            pl.BlockSpec((tb, 1), lambda i: (i, 0)),
        ],
        out_specs=pl.BlockSpec((8, 128), lambda i: (i, 0)),
        compiler_params=pltpu.CompilerParams(
            dimension_semantics=("parallel",),           # disjoint per-block outputs
            vmem_limit_bytes=32 * 1024 * 1024,
        ),
    )(logits, tgt2, w2)
    return jnp.sum(partials)   # every non-[0,0] entry of each tile is an exact zero


def hierarchical_xentropy_loss(sent_logits, sent_targets,
                               word_logits_list, word_targets_list,
                               weight_sentence_loss=5.0, weight_word_loss=1.0):
    """outputs[0] -> sent_logits (B, S, C_sent); targets[0] -> sent_targets (B, S)
       outputs[1] -> list (len S) of word logits (N_j, V); targets[1] -> list of (N_j,)"""
    # TODO(synk): nn.CrossEntropyLoss's default ignore_index=-100 is not modeled;
    #             all targets are assumed to be valid class ids (as in the module's usage).
    b, s, c_sent = sent_logits.shape

    # loss_s = sum_j mean_over_batch CE  ==  (1/B) * sum over all (i, j) sentence rows
    loss_s = weighted_cross_entropy_sum(
        sent_logits.reshape(b * s, c_sent),
        sent_targets.reshape(b * s),
        jnp.full((b * s,), 1.0 / b, jnp.float32),
    )

    # loss_w = sum_j mean_over_rows_j CE  -> one kernel call on the concatenated
    # word logits with per-row weight 1 / N_j
    word_logits = jnp.concatenate(list(word_logits_list), axis=0)
    word_targets = jnp.concatenate(list(word_targets_list), axis=0)
    word_weights = jnp.concatenate(
        [jnp.full((wl.shape[0],), 1.0 / wl.shape[0], jnp.float32)
         for wl in word_logits_list], axis=0)
    loss_w = weighted_cross_entropy_sum(word_logits, word_targets, word_weights)

    total = weight_sentence_loss * loss_s + weight_word_loss * loss_w
    return total, loss_s, loss_w


def _ce_mean_ref(logits, tgt):
    logits = logits.astype(jnp.float32)
    m = jnp.max(logits, axis=1, keepdims=True)
    lse = (m + jnp.log(jnp.sum(jnp.exp(logits - m), axis=1, keepdims=True)))[:, 0]
    picked = jnp.take_along_axis(logits, tgt[:, None].astype(jnp.int32), axis=1)[:, 0]
    return jnp.mean(lse - picked)


def _reference(sent_logits, sent_targets, word_logits_list, word_targets_list,
               weight_sentence_loss=5.0, weight_word_loss=1.0):
    """Pure-JAX re-implementation of HierarchicalXEntropyLoss.forward for checking."""
    _, s, _ = sent_logits.shape
    loss_s = sum(_ce_mean_ref(sent_logits[:, j], sent_targets[:, j]) for j in range(s))
    loss_w = sum(_ce_mean_ref(l, t) for l, t in zip(word_logits_list, word_targets_list))
    return weight_sentence_loss * loss_s + weight_word_loss * loss_w


if __name__ == "__main__":
    # Small deterministic example consistent with forward():
    #   outputs[0]: (B, S, C_sent) sentence-RNN stop logits, targets[0]: (B, S)
    #   outputs[1]: list of S word-logit tensors (N_j, V),   targets[1]: list of (N_j,)
    B, S, C_SENT, VOCAB = 2, 3, 2, 32
    WORD_COUNTS = [5, 4, 3]

    key = jax.random.PRNGKey(0)
    keys = jax.random.split(key, 2 + 2 * S)

    sent_logits = jax.random.normal(keys[0], (B, S, C_SENT), dtype=jnp.float32)
    sent_targets = jax.random.randint(keys[1], (B, S), 0, C_SENT, dtype=jnp.int32)

    word_logits_list, word_targets_list = [], []
    for j in range(S):
        word_logits_list.append(
            jax.random.normal(keys[2 + 2 * j], (WORD_COUNTS[j], VOCAB), dtype=jnp.float32))
        word_targets_list.append(
            jax.random.randint(keys[3 + 2 * j], (WORD_COUNTS[j],), 0, VOCAB, dtype=jnp.int32))

    total, loss_s, loss_w = hierarchical_xentropy_loss(
        sent_logits, sent_targets, word_logits_list, word_targets_list)
    jax.block_until_ready(total)

    ref = _reference(sent_logits, sent_targets, word_logits_list, word_targets_list)
    assert jnp.allclose(total, ref, rtol=1e-5, atol=1e-5), (total, ref)

    print("KERNEL_OK")
</pallas_src>

<mosaic_0001>
module attributes {stable_mosaic.version = 11 : i64} {
  func.func @_weighted_ce_kernel(%arg0: i32, %arg1: memref<8x2xf32, #tpu.memory_space<vmem>>, %arg2: memref<8x1xi32, #tpu.memory_space<vmem>>, %arg3: memref<8x1xf32, #tpu.memory_space<vmem>>, %arg4: memref<8x128xf32, #tpu.memory_space<vmem>>) attributes {dimension_semantics = [#tpu.dimension_semantics<parallel>], iteration_bounds = array<i64: 1>, scalar_prefetch = 0 : i64, scratch_operands = 0 : i64, tpu.core_type = #tpu.core_type<tc>, window_params = [{transform_indices = @transform_0, window_bounds = array<i64: 8, 2>}, {transform_indices = @transform_1, window_bounds = array<i64: 8, 1>}, {transform_indices = @transform_2, window_bounds = array<i64: 8, 1>}, {transform_indices = @transform_3, window_bounds = array<i64: 8, 128>}]} {
    %c0 = arith.constant 0 : index
    %c0_0 = arith.constant 0 : index
    %0 = vector.load %arg1[%c0, %c0_0] : memref<8x2xf32, #tpu.memory_space<vmem>>, vector<8x2xf32>
    %c0_1 = arith.constant 0 : index
    %c0_2 = arith.constant 0 : index
    %1 = vector.load %arg2[%c0_1, %c0_2] : memref<8x1xi32, #tpu.memory_space<vmem>>, vector<8x1xi32>
    %c0_3 = arith.constant 0 : index
    %c0_4 = arith.constant 0 : index
    %2 = vector.load %arg3[%c0_3, %c0_4] : memref<8x1xf32, #tpu.memory_space<vmem>>, vector<8x1xf32>
    %cst = arith.constant dense<0xFF800000> : vector<8xf32>
    %3 = vector.multi_reduction <maximumf>, %0, %cst [1] : vector<8x2xf32> to vector<8xf32>
    %4 = vector.shape_cast %3 : vector<8xf32> to vector<8x1xf32>
    %5 = vector.broadcast %4 : vector<8x1xf32> to vector<8x2xf32>
    %6 = arith.subf %0, %5 : vector<8x2xf32>
    %7 = math.exp %6 : vector<8x2xf32>
    %cst_5 = arith.constant dense<0.000000e+00> : vector<8xf32>
    %8 = vector.multi_reduction <add>, %7, %cst_5 [1] : vector<8x2xf32> to vector<8xf32>
    %9 = vector.shape_cast %8 : vector<8xf32> to vector<8x1xf32>
    %10 = math.log %9 : vector<8x1xf32>
    %11 = arith.addf %4, %10 : vector<8x1xf32>
    %12 = tpu.iota {dimensions = array<i32: 1>} : vector<8x2xi32>
    %13 = vector.broadcast %1 : vector<8x1xi32> to vector<8x2xi32>
    %14 = arith.cmpi eq, %12, %13 : vector<8x2xi32>
    %cst_6 = arith.constant 0.000000e+00 : f32
    %15 = vector.broadcast %cst_6 : f32 to vector<8x2xf32>
    %16 = arith.select %14, %0, %15 : vector<8x2xi1>, vector<8x2xf32>
    %cst_7 = arith.constant dense<0.000000e+00> : vector<8xf32>
    %17 = vector.multi_reduction <add>, %16, %cst_7 [1] : vector<8x2xf32> to vector<8xf32>
    %18 = vector.shape_cast %17 : vector<8xf32> to vector<8x1xf32>
    %19 = arith.subf %11, %18 : vector<8x1xf32>
    %20 = arith.mulf %19, %2 : vector<8x1xf32>
    %cst_8 = arith.constant dense<0.000000e+00> : vector<1xf32>
    %21 = vector.multi_reduction <add>, %20, %cst_8 [0] : vector<8x1xf32> to vector<1xf32>
    %22 = vector.shape_cast %21 : vector<1xf32> to vector<1x1xf32>
    %23 = tpu.iota {dimensions = array<i32: 0>} : vector<8x128xi32>
    %24 = tpu.iota {dimensions = array<i32: 1>} : vector<8x128xi32>
    %c0_i32 = arith.constant 0 : i32
    %25 = vector.broadcast %c0_i32 : i32 to vector<8x128xi32>
    %26 = arith.cmpi eq, %23, %25 : vector<8x128xi32>
    %c0_i32_9 = arith.constant 0 : i32
    %27 = vector.broadcast %c0_i32_9 : i32 to vector<8x128xi32>
    %28 = arith.cmpi eq, %24, %27 : vector<8x128xi32>
    %29 = arith.andi %26, %28 : vector<8x128xi1>
    %cst_10 = arith.constant 0.000000e+00 : f32
    %30 = vector.shape_cast %22 : vector<1x1xf32> to vector<1x1xf32>
    %31 = vector.broadcast %30 : vector<1x1xf32> to vector<8x128xf32>
    %32 = vector.broadcast %cst_10 : f32 to vector<8x128xf32>
    %33 = arith.select %29, %31, %32 : vector<8x128xi1>, vector<8x128xf32>
    %c0_11 = arith.constant 0 : index
    %c0_12 = arith.constant 0 : index
    %34 = vector.load %arg4[%c0_11, %c0_12] : memref<8x128xf32, #tpu.memory_space<vmem>>, vector<8x128xf32>
    tpu.vector_store %arg4[%c0_11, %c0_12], %33 {strides = array<i32>} : memref<8x128xf32, #tpu.memory_space<vmem>>, vector<8x128xf32>,
    return
  }
  func.func @transform_0(%arg0: i32) -> (i32, i32) {
    %c0_i32 = arith.constant 0 : i32
    %c0_i32_0 = arith.constant 0 : i32
    return %arg0, %c0_i32 : i32, i32
  }
  func.func @transform_1(%arg0: i32) -> (i32, i32) {
    %c0_i32 = arith.constant 0 : i32
    %c0_i32_0 = arith.constant 0 : i32
    return %arg0, %c0_i32 : i32, i32
  }
  func.func @transform_2(%arg0: i32) -> (i32, i32) {
    %c0_i32 = arith.constant 0 : i32
    %c0_i32_0 = arith.constant 0 : i32
    return %arg0, %c0_i32 : i32, i32
  }
  func.func @transform_3(%arg0: i32) -> (i32, i32) {
    %c0_i32 = arith.constant 0 : i32
    %c0_i32_0 = arith.constant 0 : i32
    return %arg0, %c0_i32 : i32, i32
  }
}

</mosaic_0001>

<llo_original>
// kernel: tpu_custom_call.1
$region0: #{tpu_custom_call.1}
  #allocation0 [shape = 'u32[]', space=smem, size = 0x4, offset = 0x4, fixed_abs, tag = 'smem constant byte address 0x4 - core index']
  #allocation1 [shape = 'u32[144,128]{1,0:T(1,128)}', space=vmem, size = 0x12000, scoped, tag = 'internal scratch']
  %s0 = inlined_call_operand.vmem [shape: f32[8,2], index: 0, kind: input, shape index: {}]
  %s1 = inlined_call_operand.vmem [shape: s32[8,1], index: 1, kind: input, shape index: {}]
  %s2 = inlined_call_operand.vmem [shape: f32[8,1], index: 2, kind: input, shape index: {}]
  %s3 = inlined_call_operand.hbm [shape: f32[8,128], index: 3, kind: output, shape index: {}]
  %s4 = sld [smem:[#allocation0]]
  $region22: #{tpu_custom_call.1} parent=0
    _
  %s6 = ssub.s32 1, %s4
  %s7 = scalar_select 0, %s6, %s4
  $region1: #{tpu_custom_call.1} parent=0
    #allocation2 [shape = 'u8[4096]{0}', space=vmem, size = 0x1000, scoped, tag = 'output window, operand 0, single buffered']
    #allocation3 [shape = 's32[1]{0}', space=sflag, size = 0x4, scoped, tag = 'scoped memory for tpu_custom_call.1']
    %8 = vsyncpa [#allocation3], 0
    // Predicated region
    $region2: #{tpu_custom_call.1} parent=1 // pred_check
      _
    $region3: #{tpu_custom_call.1} parent=1 // pred_check_branch
      %10 = sbr.rel (0) target = $region5
    $region4: #{tpu_custom_call.1} parent=1 // pred_region
      _
    $region5: #{tpu_custom_call.1} parent=1 // pred_fallthru
      _
    // Predicated region
    $region6: #{tpu_custom_call.1} parent=1 // pred_check
      _
    $region7: #{tpu_custom_call.1} parent=1 // pred_check_branch
      %12 = sbr.rel (0) target = $region9
    $region8: #{tpu_custom_call.1} parent=1 // pred_region
      _
    $region9: #{tpu_custom_call.1} parent=1 // pred_fallthru
      _
    // Predicated region
    $region10: #{tpu_custom_call.1} parent=1 // pred_check
      _
    $region11: #{tpu_custom_call.1} parent=1 // pred_check_branch
      %14 = sbr.rel (0) target = $region13
    $region12: #{tpu_custom_call.1} parent=1 // pred_region
      _
    $region13: #{tpu_custom_call.1} parent=1 // pred_fallthru
      _
    %v15 = vld [vmem:[%s0] sm:$0xff]
    %v16 = vld [vmem:[%s1] sm:$0xff]
    %v17 = vld [vmem:[%s2] sm:$0xff]
    %vm18 = vcmask 15360
    %v19 = vsel %vm18, %v15, -inf
    %20 = vmax.xlane.f32.xlu0 %v19
    %v21 = vpop.xlane.xlu0 %20
    %v22 = vsub.f32 %v15, %v21
    %v23 = vmul.f32 %v22, 1.442695
    %v24 = vpow.pop %v23
    %v25 = vsel %vm18, %v24, 0.0
    %26 = vadd.xlane.f32.xlu0 %v25
    %v27 = vpop.xlane.xlu0 %26
    %v28 = vlog2.pop %v27
    %v29 = vmul.f32 %v28, 0.6931472
    %v30 = vadd.f32 %v21, %v29
    %v31 = vlaneseq
    %v32 = vand.u32 %v31, 127
    %33 = vset.pattern.permute.xlu0 0
    %34 = vperm.xlu0 %33, %v16
    %v35 = vpop.permute.xlu0 %34
    %vm36 = vcmp.eq.s32.totalorder %v32, %v35
    %v37 = vsel %vm36, %v15, 0.0
    %v38 = vsel %vm18, %v37, 0.0
    %39 = vadd.xlane.f32.xlu0 %v38
    %v40 = vpop.xlane.xlu0 %39
    %v41 = vsub.f32 %v30, %v40
    %v42 = vmul.f32 %v41, %v17
    %vm43 = vcmask 7168
    %v44 = vsel %vm43, %v42, 0.0
    %v45 = vrot.slane %v44, 4
    %v46 = vadd.f32 %v44, %v45
    %v47 = vrot.slane %v46, 2
    %v48 = vadd.f32 %v46, %v47
    %v49 = vrot.slane %v48, 1
    %v50 = vadd.f32 %v48, %v49
    %v51 = vlaneseq
    %v52 = vshrl.u32 %v51, 7
    %vm53 = vcmp.eq.s32.totalorder %v52, 0
    %vm54 = vcmp.eq.s32.totalorder %v32, 0
    %vm55 = vmand %vm53, %vm54
    %57 = vset.pattern.permute.xlu0 0
    %58 = vperm.xlu0 %57, %v50
    %v59 = vpop.permute.xlu0 %58
    %v61 = vsel %vm55, %v59, 0.0
    %62 = vst [vmem:[#allocation2] sm:$0xff] %v61
    // Predicated region
    $region14: #{tpu_custom_call.1} parent=1 // pred_check
      _
    $region15: #{tpu_custom_call.1} parent=1 // pred_check_branch
      %64 = sbr.rel (0) target = $region17
    $region16: #{tpu_custom_call.1} parent=1 // pred_region
      %s66 = ssub.s32 128, 128
      %67 = vsyncadd [#allocation3], %s66
      %s69 = sshll.u32 [#allocation2], 4
      %s70 = int_to_ptr.vmem [resolvable:$true] %s69
      %72 = dma.vmem_to_hbm [thread:$0]  %s70, 128, %s3, [#allocation3]
    $region17: #{tpu_custom_call.1} parent=1 // pred_fallthru
      _
    // Predicated region
    $region18: #{tpu_custom_call.1} parent=1 // pred_check
      _
    $region19: #{tpu_custom_call.1} parent=1 // pred_check_branch
      %74 = sbr.rel (0) target = $region21
    $region20: #{tpu_custom_call.1} parent=1 // pred_region
      %75 = dma.done [#allocation3], 128
    $region21: #{tpu_custom_call.1} parent=1 // pred_fallthru
      _
    %76 = vsyncpa [#allocation3], 1

</llo_original>
